<compile_context>
chip_gen: v7x
topology: tpu7x:2x2x1
jax: 0.10.0
libtpu: 0.0.40
codegen_flags: <defaults>
</compile_context>

<pallas_src>
import functools

import jax
import jax.numpy as jnp
from jax.experimental import pallas as pl
from jax.experimental.pallas import tpu as pltpu


def _round_up(n, m):
    return (n + m - 1) // m * m


# --------------------------------------------------------------------------
# Kernel
# --------------------------------------------------------------------------
def gru_cell_kernel(x_ref, h_ref, wx_ref, bx_ref, whrz_ref, whh_ref, out_ref,
                    *, hidden):
    """One batch tile of the GRU cell. `hidden` is the padded hidden size."""
    H = hidden
    x = x_ref[...]                       # (TB, in_pad)  bf16
    h = h_ref[...]                       # (TB, H)       f32
    h_bf = h.astype(jnp.bfloat16)

    # Fused x-side matmul for all three gates: (TB, 3H), f32 accumulate.
    xw = jnp.dot(x, wx_ref[...], preferred_element_type=jnp.float32) + bx_ref[...]
    # Fused h-side matmul for reset/update gates: (TB, 2H).
    hw = jnp.dot(h_bf, whrz_ref[...], preferred_element_type=jnp.float32)

    r = jax.nn.sigmoid(xw[:, :H] + hw[:, :H])             # reset ("forget") gate
    z = jax.nn.sigmoid(xw[:, H:2 * H] + hw[:, H:2 * H])   # update gate

    hr = (h * r).astype(jnp.bfloat16)
    cand = jnp.tanh(
        xw[:, 2 * H:] + jnp.dot(hr, whh_ref[...], preferred_element_type=jnp.float32)
    )

    # z*h + (1-z)*cand  ==  cand + z*(h - cand)
    out_ref[...] = (cand + z * (h - cand)).astype(out_ref.dtype)


# --------------------------------------------------------------------------
# Weight packing (hoist out of the per-call path: call once, reuse)
# --------------------------------------------------------------------------
def pack_params(params, input_size, hidden_size):
    """Pad in/hidden dims, split x/h halves, fuse along output axis, cast bf16.

    Returns (wx_all, bx_all, wh_rz, whh, in_pad, h_pad).
    """
    (wr, br), (wz, bz), (wh, bh) = params
    in_pad = _round_up(input_size, 128)   # lane-dense x tile / full MXU K tiles
    h_pad = _round_up(hidden_size, 128)   # aligned gate slices / lane-dense out

    def split_pad(w):
        wx = w[:input_size, :]            # (in, H)
        whh_ = w[input_size:, :]          # (H, H)
        wx_p = jnp.zeros((in_pad, h_pad), jnp.float32).at[
            :input_size, :hidden_size].set(wx)
        wh_p = jnp.zeros((h_pad, h_pad), jnp.float32).at[
            :hidden_size, :hidden_size].set(whh_)
        return wx_p, wh_p

    def pad_b(b):
        return jnp.zeros((1, h_pad), jnp.float32).at[0, :hidden_size].set(b)

    wrx, wrh = split_pad(wr)
    wzx, wzh = split_pad(wz)
    whx, whh = split_pad(wh)

    wx_all = jnp.concatenate([wrx, wzx, whx], axis=1).astype(jnp.bfloat16)  # (in_pad, 3H)
    wh_rz = jnp.concatenate([wrh, wzh], axis=1).astype(jnp.bfloat16)        # (H, 2H)
    whh_bf = whh.astype(jnp.bfloat16)                                       # (H, H)
    bx_all = jnp.concatenate([pad_b(br), pad_b(bz), pad_b(bh)], axis=1)     # (1, 3H) f32
    return wx_all, bx_all, wh_rz, whh_bf, in_pad, h_pad


# --------------------------------------------------------------------------
# Host-side wrapper
# --------------------------------------------------------------------------
def _pick_tb(b8, tb_max):
    """Adaptive batch tile: largest candidate <= tb_max minimizing pad waste."""
    if b8 <= tb_max:
        return b8                        # one tile, zero batch padding waste
    best_tb, best_pad = None, None
    for t in (512, 256, 128, 64, 32, 16, 8):
        if t > tb_max:
            continue
        pad = _round_up(b8, t)
        if best_pad is None or pad < best_pad or (pad == best_pad and t > best_tb):
            best_tb, best_pad = t, pad
    return best_tb


def _vmem_limit_bytes(in_pad, h_pad, tb):
    # Single-buffered weights (Buffered(1)) + double-buffered x/h/out tiles
    # + f32 compiler temporaries (xw 3H, hw 2H, r/z/hr/cand ~ 5H), +25% headroom.
    weights = in_pad * 3 * h_pad * 2 + h_pad * 2 * h_pad * 2 + h_pad * h_pad * 2 \
        + 3 * h_pad * 4
    io = 2 * (tb * in_pad * 2 + tb * h_pad * 4 + tb * h_pad * 4)
    temps = 12 * tb * h_pad * 4
    limit = int((weights + io + temps) * 1.25)
    return max(min(limit, 100 << 20), 32 << 20)


def gru_forward(x, h, packed, *, tb_max=256):
    """x: (B, input_size), h: (B, hidden_size) -> (B, hidden_size)."""
    wx_all, bx_all, wh_rz, whh, in_pad, h_pad = packed
    B, input_size = x.shape
    hidden_size = h.shape[1]

    b8 = _round_up(B, 8)
    tb = _pick_tb(b8, tb_max)
    b_pad = _round_up(b8, tb)

    x_p = jnp.zeros((b_pad, in_pad), jnp.bfloat16).at[:B, :input_size].set(
        x.astype(jnp.bfloat16))
    h_p = jnp.zeros((b_pad, h_pad), jnp.float32).at[:B, :hidden_size].set(h)

    kernel = functools.partial(gru_cell_kernel, hidden=h_pad)
    grid = (b_pad // tb,)
    single = pl.Buffered(buffer_count=1)   # resident weights: no double buffer

    out = pl.pallas_call(
        kernel,
        out_shape=jax.ShapeDtypeStruct((b_pad, h_pad), jnp.float32),
        grid_spec=pltpu.PrefetchScalarGridSpec(
            num_scalar_prefetch=0,
            grid=grid,
            in_specs=[
                pl.BlockSpec((tb, in_pad), lambda i: (i, 0)),            # x tile
                pl.BlockSpec((tb, h_pad), lambda i: (i, 0)),             # h tile
                pl.BlockSpec((in_pad, 3 * h_pad), lambda i: (0, 0),
                             pipeline_mode=single),                      # fused Wx
                pl.BlockSpec((1, 3 * h_pad), lambda i: (0, 0),
                             pipeline_mode=single),                      # fused bias
                pl.BlockSpec((h_pad, 2 * h_pad), lambda i: (0, 0),
                             pipeline_mode=single),                      # fused Wh_rz
                pl.BlockSpec((h_pad, h_pad), lambda i: (0, 0),
                             pipeline_mode=single),                      # Whh
            ],
            out_specs=pl.BlockSpec((tb, h_pad), lambda i: (i, 0)),
        ),
        compiler_params=pltpu.CompilerParams(
            dimension_semantics=("parallel",),
            vmem_limit_bytes=_vmem_limit_bytes(in_pad, h_pad, tb),
        ),
    )(x_p, h_p, wx_all, bx_all, wh_rz, whh)

    return out[:B, :hidden_size]


# --------------------------------------------------------------------------
# Parameter init + pure-JAX reference
# --------------------------------------------------------------------------
def init_params(key, input_size, hidden_size):
    """nn.Linear(input+hidden, hidden) x3, stored transposed as (in+H, H)."""
    concat = input_size + hidden_size
    ks = jax.random.split(key, 6)
    scale = 1.0 / jnp.sqrt(concat)

    def make(kw, kb):
        w = jax.random.uniform(kw, (concat, hidden_size), jnp.float32, -scale, scale)
        b = jax.random.uniform(kb, (hidden_size,), jnp.float32, -scale, scale)
        return (w, b)

    return (make(ks[0], ks[1]), make(ks[2], ks[3]), make(ks[4], ks[5]))


def gru_reference(x, h, params):
    """Pure-JAX f32 reference matching the PyTorch module exactly."""
    (wr, br), (wz, bz), (wh, bh) = params
    concat = jnp.concatenate([x, h], axis=1)
    forget = jax.nn.sigmoid(concat @ wr + br)
    update = jax.nn.sigmoid(concat @ wz + bz)
    concat2 = jnp.concatenate([x, h * forget], axis=1)
    cand = jnp.tanh(concat2 @ wh + bh)
    return update * h + (1.0 - update) * cand


if __name__ == "__main__":
    B = 8
    input_size = 16
    hidden_size = 32

    key = jax.random.PRNGKey(0)
    kx, kh, kp = jax.random.split(key, 3)
    x = jax.random.normal(kx, (B, input_size), jnp.float32)
    h = jax.random.normal(kh, (B, hidden_size), jnp.float32)
    params = init_params(kp, input_size, hidden_size)

    # Pack / pad weights once (hoisted out of the per-call path).
    packed = pack_params(params, input_size, hidden_size)
    packed = jax.tree_util.tree_map(
        lambda a: jax.block_until_ready(a) if isinstance(a, jax.Array) else a, packed)

    out = gru_forward(x, h, packed)
    jax.block_until_ready(out)

    ref = gru_reference(x, h, params)
    assert out.shape == (B, hidden_size)
    # bf16 MXU inputs -> loosened tolerance vs the fp32 reference.
    assert jnp.allclose(out, ref, atol=2e-2, rtol=2e-2), float(jnp.abs(out - ref).max())

    print("KERNEL_OK")
</pallas_src>

<mosaic_0001>
module attributes {stable_mosaic.version = 11 : i64} {
  func.func @gru_cell_kernel(%arg0: i32, %arg1: memref<8x128xbf16, #tpu.memory_space<vmem>>, %arg2: memref<8x128xf32, #tpu.memory_space<vmem>>, %arg3: memref<128x384xbf16, #tpu.memory_space<vmem>>, %arg4: memref<1x384xf32, #tpu.memory_space<vmem>>, %arg5: memref<128x256xbf16, #tpu.memory_space<vmem>>, %arg6: memref<128x128xbf16, #tpu.memory_space<vmem>>, %arg7: memref<8x128xf32, #tpu.memory_space<vmem>>) attributes {dimension_semantics = [#tpu.dimension_semantics<parallel>], iteration_bounds = array<i64: 1>, scalar_prefetch = 0 : i64, scratch_operands = 0 : i64, tpu.core_type = #tpu.core_type<tc>, window_params = [{transform_indices = @transform_0, window_bounds = array<i64: 8, 128>}, {transform_indices = @transform_1, window_bounds = array<i64: 8, 128>}, {pipeline_mode = #tpu.pipeline_mode<synchronous>, transform_indices = @transform_2, window_bounds = array<i64: 128, 384>}, {pipeline_mode = #tpu.pipeline_mode<synchronous>, transform_indices = @transform_3, window_bounds = array<i64: 1, 384>}, {pipeline_mode = #tpu.pipeline_mode<synchronous>, transform_indices = @transform_4, window_bounds = array<i64: 128, 256>}, {pipeline_mode = #tpu.pipeline_mode<synchronous>, transform_indices = @transform_5, window_bounds = array<i64: 128, 128>}, {transform_indices = @transform_6, window_bounds = array<i64: 8, 128>}]} {
    %c0 = arith.constant 0 : index
    %c0_0 = arith.constant 0 : index
    %0 = vector.load %arg1[%c0, %c0_0] : memref<8x128xbf16, #tpu.memory_space<vmem>>, vector<8x128xbf16>
    %c0_1 = arith.constant 0 : index
    %c0_2 = arith.constant 0 : index
    %1 = vector.load %arg2[%c0_1, %c0_2] : memref<8x128xf32, #tpu.memory_space<vmem>>, vector<8x128xf32>
    %2 = arith.truncf %1 : vector<8x128xf32> to vector<8x128xbf16>
    %c0_3 = arith.constant 0 : index
    %c0_4 = arith.constant 0 : index
    %3 = vector.load %arg3[%c0_3, %c0_4] : memref<128x384xbf16, #tpu.memory_space<vmem>>, vector<128x384xbf16>
    %cst = arith.constant dense<0.000000e+00> : vector<8x384xf32>
    %4 = tpu.matmul %0, %3, %cst {dimension_numbers = #tpu.dot_dimension_numbers<[1], [0], [0], [1], [0, 0, 1, 1], [], []>} : vector<8x128xbf16>, vector<128x384xbf16>, vector<8x384xf32> -> vector<8x384xf32>
    %c0_5 = arith.constant 0 : index
    %c0_6 = arith.constant 0 : index
    %5 = vector.load %arg4[%c0_5, %c0_6] : memref<1x384xf32, #tpu.memory_space<vmem>>, vector<1x384xf32>
    %6 = vector.broadcast %5 : vector<1x384xf32> to vector<8x384xf32>
    %7 = arith.addf %4, %6 : vector<8x384xf32>
    %c0_7 = arith.constant 0 : index
    %c0_8 = arith.constant 0 : index
    %8 = vector.load %arg5[%c0_7, %c0_8] : memref<128x256xbf16, #tpu.memory_space<vmem>>, vector<128x256xbf16>
    %cst_9 = arith.constant dense<0.000000e+00> : vector<8x256xf32>
    %9 = tpu.matmul %2, %8, %cst_9 {dimension_numbers = #tpu.dot_dimension_numbers<[1], [0], [0], [1], [0, 0, 1, 1], [], []>} : vector<8x128xbf16>, vector<128x256xbf16>, vector<8x256xf32> -> vector<8x256xf32>
    %10 = vector.extract_strided_slice %7 {offsets = [0, 0], sizes = [8, 128], strides = [1, 1]} : vector<8x384xf32> to vector<8x128xf32>
    %11 = vector.extract_strided_slice %9 {offsets = [0, 0], sizes = [8, 128], strides = [1, 1]} : vector<8x256xf32> to vector<8x128xf32>
    %12 = arith.addf %10, %11 : vector<8x128xf32>
    %13 = arith.negf %12 : vector<8x128xf32>
    %14 = math.exp %13 : vector<8x128xf32>
    %cst_10 = arith.constant 1.000000e+00 : f32
    %15 = vector.broadcast %cst_10 : f32 to vector<8x128xf32>
    %16 = arith.addf %15, %14 : vector<8x128xf32>
    %17 = arith.divf %15, %16 : vector<8x128xf32>
    %18 = vector.extract_strided_slice %7 {offsets = [0, 128], sizes = [8, 128], strides = [1, 1]} : vector<8x384xf32> to vector<8x128xf32>
    %19 = vector.extract_strided_slice %9 {offsets = [0, 128], sizes = [8, 128], strides = [1, 1]} : vector<8x256xf32> to vector<8x128xf32>
    %20 = arith.addf %18, %19 : vector<8x128xf32>
    %21 = arith.negf %20 : vector<8x128xf32>
    %22 = math.exp %21 : vector<8x128xf32>
    %cst_11 = arith.constant 1.000000e+00 : f32
    %23 = vector.broadcast %cst_11 : f32 to vector<8x128xf32>
    %24 = arith.addf %23, %22 : vector<8x128xf32>
    %25 = arith.divf %23, %24 : vector<8x128xf32>
    %26 = arith.mulf %1, %17 : vector<8x128xf32>
    %27 = arith.truncf %26 : vector<8x128xf32> to vector<8x128xbf16>
    %28 = vector.extract_strided_slice %7 {offsets = [0, 256], sizes = [8, 128], strides = [1, 1]} : vector<8x384xf32> to vector<8x128xf32>
    %c0_12 = arith.constant 0 : index
    %c0_13 = arith.constant 0 : index
    %29 = vector.load %arg6[%c0_12, %c0_13] : memref<128x128xbf16, #tpu.memory_space<vmem>>, vector<128x128xbf16>
    %cst_14 = arith.constant dense<0.000000e+00> : vector<8x128xf32>
    %30 = tpu.matmul %27, %29, %cst_14 {dimension_numbers = #tpu.dot_dimension_numbers<[1], [0], [0], [1], [0, 0, 1, 1], [], []>} : vector<8x128xbf16>, vector<128x128xbf16>, vector<8x128xf32> -> vector<8x128xf32>
    %31 = arith.addf %28, %30 : vector<8x128xf32>
    %32 = math.tanh %31 : vector<8x128xf32>
    %33 = arith.subf %1, %32 : vector<8x128xf32>
    %34 = arith.mulf %25, %33 : vector<8x128xf32>
    %35 = arith.addf %32, %34 : vector<8x128xf32>
    %c0_15 = arith.constant 0 : index
    %c0_16 = arith.constant 0 : index
    %36 = vector.load %arg7[%c0_15, %c0_16] : memref<8x128xf32, #tpu.memory_space<vmem>>, vector<8x128xf32>
    tpu.vector_store %arg7[%c0_15, %c0_16], %35 {strides = array<i32>} : memref<8x128xf32, #tpu.memory_space<vmem>>, vector<8x128xf32>,
    return
  }
  func.func @transform_0(%arg0: i32) -> (i32, i32) {
    %c0_i32 = arith.constant 0 : i32
    %c0_i32_0 = arith.constant 0 : i32
    return %arg0, %c0_i32 : i32, i32
  }
  func.func @transform_1(%arg0: i32) -> (i32, i32) {
    %c0_i32 = arith.constant 0 : i32
    %c0_i32_0 = arith.constant 0 : i32
    return %arg0, %c0_i32 : i32, i32
  }
  func.func @transform_2(%arg0: i32) -> (i32, i32) {
    %c0_i32 = arith.constant 0 : i32
    %c0_i32_0 = arith.constant 0 : i32
    %c0_i32_1 = arith.constant 0 : i32
    return %c0_i32, %c0_i32_0 : i32, i32
  }
  func.func @transform_3(%arg0: i32) -> (i32, i32) {
    %c0_i32 = arith.constant 0 : i32
    %c0_i32_0 = arith.constant 0 : i32
    %c0_i32_1 = arith.constant 0 : i32
    return %c0_i32, %c0_i32_0 : i32, i32
  }
  func.func @transform_4(%arg0: i32) -> (i32, i32) {
    %c0_i32 = arith.constant 0 : i32
    %c0_i32_0 = arith.constant 0 : i32
    %c0_i32_1 = arith.constant 0 : i32
    return %c0_i32, %c0_i32_0 : i32, i32
  }
  func.func @transform_5(%arg0: i32) -> (i32, i32) {
    %c0_i32 = arith.constant 0 : i32
    %c0_i32_0 = arith.constant 0 : i32
    %c0_i32_1 = arith.constant 0 : i32
    return %c0_i32, %c0_i32_0 : i32, i32
  }
  func.func @transform_6(%arg0: i32) -> (i32, i32) {
    %c0_i32 = arith.constant 0 : i32
    %c0_i32_0 = arith.constant 0 : i32
    return %arg0, %c0_i32 : i32, i32
  }
}

</mosaic_0001>

<llo_original>
// kernel: tpu_custom_call.1
$region0: #{tpu_custom_call.1}
  #allocation0 [shape = 'u32[]', space=smem, size = 0x4, offset = 0x4, fixed_abs, tag = 'smem constant byte address 0x4 - core index']
  #allocation1 [shape = 'u32[144,128]{1,0:T(1,128)}', space=vmem, size = 0x12000, scoped, tag = 'internal scratch']
  %s0 = inlined_call_operand.hbm [shape: bf16[8,128], index: 0, kind: input, shape index: {}]
  %s1 = inlined_call_operand.hbm [shape: f32[8,128], index: 1, kind: input, shape index: {}]
  %s2 = inlined_call_operand.hbm [shape: bf16[128,384], index: 2, kind: input, shape index: {}]
  %s3 = inlined_call_operand.vmem [shape: f32[1,384], index: 3, kind: input, shape index: {}]
  %s4 = inlined_call_operand.hbm [shape: bf16[128,256], index: 4, kind: input, shape index: {}]
  %s5 = inlined_call_operand.hbm [shape: bf16[128,128], index: 5, kind: input, shape index: {}]
  %s6 = inlined_call_operand.hbm [shape: f32[8,128], index: 6, kind: output, shape index: {}]
  %s7 = sld [smem:[#allocation0]]
  $region54: #{tpu_custom_call.1} parent=0
    _
  %s9 = ssub.s32 1, %s7
  %s10 = scalar_select 0, %s9, %s7
  $region1: #{tpu_custom_call.1} parent=0
    #allocation2 [shape = 'u8[2048]{0}', space=vmem, size = 0x800, scoped, tag = 'input window, operand 0, single buffered']
    #allocation3 [shape = 's32[1]{0}', space=sflag, size = 0x4, scoped, tag = 'scoped memory for tpu_custom_call.1']
    #allocation4 [shape = 's32[1]{0}', space=sflag, size = 0x4, scoped, tag = 'scoped memory for tpu_custom_call.1']
    #allocation5 [shape = 'u8[4096]{0}', space=vmem, size = 0x1000, scoped, tag = 'input window, operand 1, single buffered']
    #allocation6 [shape = 's32[1]{0}', space=sflag, size = 0x4, scoped, tag = 'scoped memory for tpu_custom_call.1']
    #allocation7 [shape = 'u8[98304]{0}', space=vmem, size = 0x18000, scoped, tag = 'input window, operand 2, single buffered']
    #allocation8 [shape = 'u8[65536]{0}', space=vmem, size = 0x10000, scoped, tag = 'input window, operand 4, single buffered']
    #allocation9 [shape = 's32[1]{0}', space=sflag, size = 0x4, scoped, tag = 'scoped memory for tpu_custom_call.1']
    #allocation10 [shape = 'u8[32768]{0}', space=vmem, size = 0x8000, scoped, tag = 'input window, operand 5, single buffered']
    #allocation11 [shape = 'u8[4096]{0}', space=vmem, size = 0x1000, scoped, tag = 'output window, operand 0, single buffered']
    %11 = vsyncpa [#allocation3], 0
    %12 = vsyncpa [#allocation6], 0
    %13 = vsyncpa [#allocation9], 0
    %14 = vsyncpa [#allocation4], 0
    // Predicated region
    $region2: #{tpu_custom_call.1} parent=1 // pred_check
      _
    $region3: #{tpu_custom_call.1} parent=1 // pred_check_branch
      %16 = sbr.rel (0) target = $region5
    $region4: #{tpu_custom_call.1} parent=1 // pred_region
      %s18 = ssub.s32 64, 64
      %19 = vsyncadd [#allocation3], %s18
      %s21 = sshll.u32 [#allocation2], 4
      %s22 = int_to_ptr.vmem [resolvable:$true] %s21
      %24 = dma.hbm_to_vmem [thread:$0]  %s0, 64, %s22, [#allocation3]
    $region5: #{tpu_custom_call.1} parent=1 // pred_fallthru
      _
    // Predicated region
    $region6: #{tpu_custom_call.1} parent=1 // pred_check
      _
    $region7: #{tpu_custom_call.1} parent=1 // pred_check_branch
      %26 = sbr.rel (0) target = $region9
    $region8: #{tpu_custom_call.1} parent=1 // pred_region
      %s28 = ssub.s32 128, 128
      %29 = vsyncadd [#allocation6], %s28
      %s31 = sshll.u32 [#allocation5], 4
      %s32 = int_to_ptr.vmem [resolvable:$true] %s31
      %34 = dma.hbm_to_vmem [thread:$0]  %s1, 128, %s32, [#allocation6]
    $region9: #{tpu_custom_call.1} parent=1 // pred_fallthru
      _
    // Predicated region
    $region10: #{tpu_custom_call.1} parent=1 // pred_check
      _
    $region11: #{tpu_custom_call.1} parent=1 // pred_check_branch
      %36 = sbr.rel (0) target = $region13
    $region12: #{tpu_custom_call.1} parent=1 // pred_region
      %s38 = ssub.s32 3072, 3072
      %39 = vsyncadd [#allocation6], %s38
      %s40 = sshll.u32 [#allocation7], 4
      %s41 = int_to_ptr.vmem [resolvable:$true] %s40
      %46 = dma.hbm_to_vmem [thread:$0]  %s2, 3072, %s41, [#allocation6], 192, 192, 12
    $region13: #{tpu_custom_call.1} parent=1 // pred_fallthru
      _
    // Predicated region
    $region14: #{tpu_custom_call.1} parent=1 // pred_check
      _
    $region15: #{tpu_custom_call.1} parent=1 // pred_check_branch
      %48 = sbr.rel (0) target = $region17
    $region16: #{tpu_custom_call.1} parent=1 // pred_region
      _
    $region17: #{tpu_custom_call.1} parent=1 // pred_fallthru
      _
    // Predicated region
    $region18: #{tpu_custom_call.1} parent=1 // pred_check
      _
    $region19: #{tpu_custom_call.1} parent=1 // pred_check_branch
      %50 = sbr.rel (0) target = $region21
    $region20: #{tpu_custom_call.1} parent=1 // pred_region
      %s52 = ssub.s32 2048, 2048
      %53 = vsyncadd [#allocation9], %s52
      %s54 = sshll.u32 [#allocation8], 4
      %s55 = int_to_ptr.vmem [resolvable:$true] %s54
      %60 = dma.hbm_to_vmem [thread:$0]  %s4, 2048, %s55, [#allocation9], 128, 128, 8
    $region21: #{tpu_custom_call.1} parent=1 // pred_fallthru
      _
    // Predicated region
    $region22: #{tpu_custom_call.1} parent=1 // pred_check
      _
    $region23: #{tpu_custom_call.1} parent=1 // pred_check_branch
      %62 = sbr.rel (0) target = $region25
    $region24: #{tpu_custom_call.1} parent=1 // pred_region
      %s64 = ssub.s32 1024, 1024
      %65 = vsyncadd [#allocation9], %s64
      %s66 = sshll.u32 [#allocation10], 4
      %s67 = int_to_ptr.vmem [resolvable:$true] %s66
      %72 = dma.hbm_to_vmem [thread:$0]  %s5, 1024, %s67, [#allocation9], 64, 64, 4
    $region25: #{tpu_custom_call.1} parent=1 // pred_fallthru
      _
    // Predicated region
    $region26: #{tpu_custom_call.1} parent=1 // pred_check
      _
    $region27: #{tpu_custom_call.1} parent=1 // pred_check_branch
      %74 = sbr.rel (0) target = $region29
    $region28: #{tpu_custom_call.1} parent=1 // pred_region
      %75 = dma.done [#allocation3], 64
    $region29: #{tpu_custom_call.1} parent=1 // pred_fallthru
      _
    // Predicated region
    $region30: #{tpu_custom_call.1} parent=1 // pred_check
      _
    $region31: #{tpu_custom_call.1} parent=1 // pred_check_branch
      %77 = sbr.rel (0) target = $region33
    $region32: #{tpu_custom_call.1} parent=1 // pred_region
      %78 = dma.done [#allocation6], 128
    $region33: #{tpu_custom_call.1} parent=1 // pred_fallthru
      _
    // Predicated region
    $region34: #{tpu_custom_call.1} parent=1 // pred_check
      _
    $region35: #{tpu_custom_call.1} parent=1 // pred_check_branch
      %80 = sbr.rel (0) target = $region37
    $region36: #{tpu_custom_call.1} parent=1 // pred_region
      %81 = dma.done [#allocation6], 3072
    $region37: #{tpu_custom_call.1} parent=1 // pred_fallthru
      _
    // Predicated region
    $region38: #{tpu_custom_call.1} parent=1 // pred_check
      _
    $region39: #{tpu_custom_call.1} parent=1 // pred_check_branch
      %83 = sbr.rel (0) target = $region41
    $region40: #{tpu_custom_call.1} parent=1 // pred_region
      %84 = dma.done [#allocation9], 2048
    $region41: #{tpu_custom_call.1} parent=1 // pred_fallthru
      _
    // Predicated region
    $region42: #{tpu_custom_call.1} parent=1 // pred_check
      _
    $region43: #{tpu_custom_call.1} parent=1 // pred_check_branch
      %86 = sbr.rel (0) target = $region45
    $region44: #{tpu_custom_call.1} parent=1 // pred_region
      %87 = dma.done [#allocation9], 1024
    $region45: #{tpu_custom_call.1} parent=1 // pred_fallthru
      _
    %v89 = vld [vmem:[#allocation2] sm:$0xf]
    %v90 = vld [vmem:[#allocation5] sm:$0xff]
    %v91 = vpack.c.bf16 %v90, %v90
    %v92 = vld [vmem:[#allocation7] sm:$0xff]
    %v93 = vld [vmem:[#allocation7 + $0x8] sm:$0xf]
    %v94 = vld [vmem:[#allocation7 + $0xc] sm:$0xff]
    %v95 = vld [vmem:[#allocation7 + $0x14] sm:$0xf]
    %v96 = vld [vmem:[#allocation7 + $0x18] sm:$0xff]
    %v97 = vld [vmem:[#allocation7 + $0x20] sm:$0xf]
    %v98 = vld [vmem:[#allocation7 + $0x24] sm:$0xff]
    %v99 = vld [vmem:[#allocation7 + $0x2c] sm:$0xf]
    %v100 = vld [vmem:[#allocation7 + $0x30] sm:$0xff]
    %v101 = vld [vmem:[#allocation7 + $0x38] sm:$0xf]
    %v102 = vld [vmem:[#allocation7 + $0x3c] sm:$0xff]
    %v103 = vld [vmem:[#allocation7 + $0x44] sm:$0xf]
    %v104 = vld [vmem:[#allocation7 + $0x48] sm:$0xff]
    %v105 = vld [vmem:[#allocation7 + $0x50] sm:$0xf]
    %v106 = vld [vmem:[#allocation7 + $0x54] sm:$0xff]
    %v107 = vld [vmem:[#allocation7 + $0x5c] sm:$0xf]
    %v108 = vld [vmem:[#allocation7 + $0x60] sm:$0xff]
    %v109 = vld [vmem:[#allocation7 + $0x68] sm:$0xf]
    %v110 = vld [vmem:[#allocation7 + $0x6c] sm:$0xff]
    %v111 = vld [vmem:[#allocation7 + $0x74] sm:$0xf]
    %v112 = vld [vmem:[#allocation7 + $0x78] sm:$0xff]
    %v113 = vld [vmem:[#allocation7 + $0x80] sm:$0xf]
    %v114 = vld [vmem:[#allocation7 + $0x84] sm:$0xff]
    %v115 = vld [vmem:[#allocation7 + $0x8c] sm:$0xf]
    %v116 = vld [vmem:[#allocation7 + $0x90] sm:$0xff]
    %v117 = vld [vmem:[#allocation7 + $0x98] sm:$0xf]
    %v118 = vld [vmem:[#allocation7 + $0x9c] sm:$0xff]
    %v119 = vld [vmem:[#allocation7 + $0xa4] sm:$0xf]
    %v120 = vld [vmem:[#allocation7 + $0xa8] sm:$0xff]
    %v121 = vld [vmem:[#allocation7 + $0xb0] sm:$0xf]
    %v122 = vld [vmem:[#allocation7 + $0xb4] sm:$0xff]
    %v123 = vld [vmem:[#allocation7 + $0xbc] sm:$0xf]
    %v124 = vld [vmem:[%s3] sm:$0x7]
    %v126 = vlaneseq
    %v127 = vshrl.u32 %v126, 7
    %v128 = vsub.s32 0, %v127
    %v129 = vrot.slane %v124, %v128
    %v130 = vlaneseq
    %v131 = vshrl.u32 %v130, 7
    %v132 = vsub.s32 1, %v131
    %v133 = vrot.slane %v124, %v132
    %v134 = vlaneseq
    %v135 = vshrl.u32 %v134, 7
    %v136 = vsub.s32 2, %v135
    %v137 = vrot.slane %v124, %v136
    %v173 = vunpack.c.l.b16 %v92
    %v174 = vunpack.c.h.b16 %v92
    %v175 = vunpack.c.l.b16 %v93
    %v176 = vunpack.c.l.b16 %v94
    %v177 = vunpack.c.h.b16 %v94
    %v178 = vunpack.c.l.b16 %v95
    %v179 = vunpack.c.l.b16 %v96
    %v180 = vunpack.c.h.b16 %v96
    %v181 = vunpack.c.l.b16 %v97
    %v182 = vunpack.c.l.b16 %v98
    %v183 = vunpack.c.h.b16 %v98
    %v184 = vunpack.c.l.b16 %v99
    %v185 = vunpack.c.l.b16 %v100
    %v186 = vunpack.c.h.b16 %v100
    %v187 = vunpack.c.l.b16 %v101
    %v188 = vunpack.c.l.b16 %v102
    %v189 = vunpack.c.h.b16 %v102
    %v190 = vunpack.c.l.b16 %v103
    %v191 = vunpack.c.l.b16 %v104
    %v192 = vunpack.c.h.b16 %v104
    %v193 = vunpack.c.l.b16 %v105
    %v194 = vunpack.c.l.b16 %v106
    %v195 = vunpack.c.h.b16 %v106
    %v196 = vunpack.c.l.b16 %v107
    %v197 = vunpack.c.l.b16 %v108
    %v198 = vunpack.c.h.b16 %v108
    %v199 = vunpack.c.l.b16 %v109
    %v200 = vunpack.c.l.b16 %v110
    %v201 = vunpack.c.h.b16 %v110
    %v202 = vunpack.c.l.b16 %v111
    %v203 = vunpack.c.l.b16 %v112
    %v204 = vunpack.c.h.b16 %v112
    %v205 = vunpack.c.l.b16 %v113
    %v206 = vunpack.c.l.b16 %v114
    %v207 = vunpack.c.h.b16 %v114
    %v208 = vunpack.c.l.b16 %v115
    %v209 = vunpack.c.l.b16 %v116
    %v210 = vunpack.c.h.b16 %v116
    %v211 = vunpack.c.l.b16 %v117
    %v212 = vunpack.c.l.b16 %v118
    %v213 = vunpack.c.h.b16 %v118
    %v214 = vunpack.c.l.b16 %v119
    %v215 = vunpack.c.l.b16 %v120
    %v216 = vunpack.c.h.b16 %v120
    %v217 = vunpack.c.l.b16 %v121
    %v218 = vunpack.c.l.b16 %v122
    %v219 = vunpack.c.h.b16 %v122
    %v220 = vunpack.c.l.b16 %v123
    %v221 = vpack.c.b16 %v176, %v173
    %v222 = vpack.c.b16 %v177, %v174
    %v223 = vpack.c.b16 %v178, %v175
    %v224 = vpack.c.b16 %v182, %v179
    %v225 = vpack.c.b16 %v183, %v180
    %v226 = vpack.c.b16 %v184, %v181
    %v227 = vpack.c.b16 %v188, %v185
    %v228 = vpack.c.b16 %v189, %v186
    %v229 = vpack.c.b16 %v190, %v187
    %v230 = vpack.c.b16 %v194, %v191
    %v231 = vpack.c.b16 %v195, %v192
    %v232 = vpack.c.b16 %v196, %v193
    %v233 = vpack.c.b16 %v200, %v197
    %v234 = vpack.c.b16 %v201, %v198
    %v235 = vpack.c.b16 %v202, %v199
    %v236 = vpack.c.b16 %v206, %v203
    %v237 = vpack.c.b16 %v207, %v204
    %v238 = vpack.c.b16 %v208, %v205
    %v239 = vpack.c.b16 %v212, %v209
    %v240 = vpack.c.b16 %v213, %v210
    %v241 = vpack.c.b16 %v214, %v211
    %v242 = vpack.c.b16 %v218, %v215
    %v243 = vpack.c.b16 %v219, %v216
    %v244 = vpack.c.b16 %v220, %v217
    %269 = vmatprep.subr.bf16.mxu0 %v222
    %270 = vmatpush1.bf16.msra.mxu0 %v221
    %271 = vmatprep.subr.bf16.mxu0 %v225
    %272 = vmatpush1.bf16.msra.mxu0 %v224
    %273 = vmatprep.subr.bf16.mxu0 %v228
    %274 = vmatpush1.bf16.msra.mxu0 %v227
    %275 = vmatprep.subr.bf16.mxu0 %v231
    %276 = vmatpush1.bf16.msra.mxu0 %v230
    %277 = vmatprep.subr.bf16.mxu0 %v234
    %278 = vmatpush1.bf16.msra.mxu0 %v233
    %279 = vmatprep.subr.bf16.mxu0 %v237
    %280 = vmatpush1.bf16.msra.mxu0 %v236
    %281 = vmatprep.subr.bf16.mxu0 %v240
    %282 = vmatpush1.bf16.msra.mxu0 %v239
    %283 = vmatprep.subr.bf16.mxu0 %v243
    %284 = vmatpush1.bf16.msra.mxu0 %v242
    %285 = vmatprep.subr.bf16.mxu0 0
    %286 = vmatpush1.bf16.msra.mxu0 0
    %287 = vmatprep.subr.bf16.mxu0 0
    %288 = vmatpush1.bf16.msra.mxu0 0
    %289 = vmatprep.subr.bf16.mxu0 0
    %290 = vmatpush1.bf16.msra.mxu0 0
    %291 = vmatprep.subr.bf16.mxu0 0
    %292 = vmatpush1.bf16.msra.mxu0 0
    %293 = vmatprep.subr.bf16.mxu0 0
    %294 = vmatpush1.bf16.msra.mxu0 0
    %295 = vmatprep.subr.bf16.mxu0 0
    %296 = vmatpush1.bf16.msra.mxu0 0
    %297 = vmatprep.subr.bf16.mxu0 0
    %298 = vmatpush1.bf16.msra.mxu0 0
    %299 = vmatprep.subr.bf16.mxu0 0
    %300 = vmatpush1.bf16.msra.mxu0 0
    %301 = vmatprep.mubr.bf16.mxu0 0
    %302 = vmatmul.mubr.bf16.gmra.mrb[0].mxu0 %v89
    %v303 = vpop.f32.mrb[0].mxu0
    %v304 = vadd.f32 %v129, %v303
    %v305 = vpop.f32.mrb[0].mxu0
    %v306 = vadd.f32 %v133, %v305
    %v307 = vpop.f32.mrb[0].mxu0
    %v308 = vpop.f32.mrb[0].mxu0
    %309 = vdwg.mxu0
    %310 = vmatprep.subr.bf16.mxu0 0
    %311 = vmatpush1.bf16.msra.mxu0 %v223
    %312 = vmatprep.subr.bf16.mxu0 0
    %313 = vmatpush1.bf16.msra.mxu0 %v226
    %314 = vmatprep.subr.bf16.mxu0 0
    %315 = vmatpush1.bf16.msra.mxu0 %v229
    %316 = vmatprep.subr.bf16.mxu0 0
    %317 = vmatpush1.bf16.msra.mxu0 %v232
    %318 = vmatprep.subr.bf16.mxu0 0
    %319 = vmatpush1.bf16.msra.mxu0 %v235
    %320 = vmatprep.subr.bf16.mxu0 0
    %321 = vmatpush1.bf16.msra.mxu0 %v238
    %322 = vmatprep.subr.bf16.mxu0 0
    %323 = vmatpush1.bf16.msra.mxu0 %v241
    %324 = vmatprep.subr.bf16.mxu0 0
    %325 = vmatpush1.bf16.msra.mxu0 %v244
    %326 = vmatprep.subr.bf16.mxu0 0
    %327 = vmatpush1.bf16.msra.mxu0 0
    %328 = vmatprep.subr.bf16.mxu0 0
    %329 = vmatpush1.bf16.msra.mxu0 0
    %330 = vmatprep.subr.bf16.mxu0 0
    %331 = vmatpush1.bf16.msra.mxu0 0
    %332 = vmatprep.subr.bf16.mxu0 0
    %333 = vmatpush1.bf16.msra.mxu0 0
    %334 = vmatprep.subr.bf16.mxu0 0
    %335 = vmatpush1.bf16.msra.mxu0 0
    %336 = vmatprep.subr.bf16.mxu0 0
    %337 = vmatpush1.bf16.msra.mxu0 0
    %338 = vmatprep.subr.bf16.mxu0 0
    %339 = vmatpush1.bf16.msra.mxu0 0
    %340 = vmatprep.subr.bf16.mxu0 0
    %341 = vmatpush1.bf16.msra.mxu0 0
    %342 = vmatprep.mubr.bf16.mxu0 0
    %343 = vmatmul.mubr.bf16.gmra.mrb[0].mxu0 %v89
    %v344 = vpop.f32.mrb[0].mxu0
    %v345 = vadd.f32 %v137, %v344
    %v346 = vpop.f32.mrb[0].mxu0
    %v347 = vpop.f32.mrb[0].mxu0
    %v348 = vpop.f32.mrb[0].mxu0
    %349 = vdwg.mxu0
    %v350 = vld [vmem:[#allocation8] sm:$0xff]
    %v351 = vld [vmem:[#allocation8 + $0x8] sm:$0xff]
    %v352 = vld [vmem:[#allocation8 + $0x10] sm:$0xff]
    %v353 = vld [vmem:[#allocation8 + $0x18] sm:$0xff]
    %v354 = vld [vmem:[#allocation8 + $0x20] sm:$0xff]
    %v355 = vld [vmem:[#allocation8 + $0x28] sm:$0xff]
    %v356 = vld [vmem:[#allocation8 + $0x30] sm:$0xff]
    %v357 = vld [vmem:[#allocation8 + $0x38] sm:$0xff]
    %v358 = vld [vmem:[#allocation8 + $0x40] sm:$0xff]
    %v359 = vld [vmem:[#allocation8 + $0x48] sm:$0xff]
    %v360 = vld [vmem:[#allocation8 + $0x50] sm:$0xff]
    %v361 = vld [vmem:[#allocation8 + $0x58] sm:$0xff]
    %v362 = vld [vmem:[#allocation8 + $0x60] sm:$0xff]
    %v363 = vld [vmem:[#allocation8 + $0x68] sm:$0xff]
    %v364 = vld [vmem:[#allocation8 + $0x70] sm:$0xff]
    %v365 = vld [vmem:[#allocation8 + $0x78] sm:$0xff]
    %v382 = vunpack.c.l.b16 %v350
    %v383 = vunpack.c.h.b16 %v350
    %v384 = vunpack.c.l.b16 %v351
    %v385 = vunpack.c.h.b16 %v351
    %v386 = vunpack.c.l.b16 %v352
    %v387 = vunpack.c.h.b16 %v352
    %v388 = vunpack.c.l.b16 %v353
    %v389 = vunpack.c.h.b16 %v353
    %v390 = vunpack.c.l.b16 %v354
    %v391 = vunpack.c.h.b16 %v354
    %v392 = vunpack.c.l.b16 %v355
    %v393 = vunpack.c.h.b16 %v355
    %v394 = vunpack.c.l.b16 %v356
    %v395 = vunpack.c.h.b16 %v356
    %v396 = vunpack.c.l.b16 %v357
    %v397 = vunpack.c.h.b16 %v357
    %v398 = vunpack.c.l.b16 %v358
    %v399 = vunpack.c.h.b16 %v358
    %v400 = vunpack.c.l.b16 %v359
    %v401 = vunpack.c.h.b16 %v359
    %v402 = vunpack.c.l.b16 %v360
    %v403 = vunpack.c.h.b16 %v360
    %v404 = vunpack.c.l.b16 %v361
    %v405 = vunpack.c.h.b16 %v361
    %v406 = vunpack.c.l.b16 %v362
    %v407 = vunpack.c.h.b16 %v362
    %v408 = vunpack.c.l.b16 %v363
    %v409 = vunpack.c.h.b16 %v363
    %v410 = vunpack.c.l.b16 %v364
    %v411 = vunpack.c.h.b16 %v364
    %v412 = vunpack.c.l.b16 %v365
    %v413 = vunpack.c.h.b16 %v365
    %v414 = vpack.c.b16 %v384, %v382
    %v415 = vpack.c.b16 %v385, %v383
    %v416 = vpack.c.b16 %v388, %v386
    %v417 = vpack.c.b16 %v389, %v387
    %v418 = vpack.c.b16 %v392, %v390
    %v419 = vpack.c.b16 %v393, %v391
    %v420 = vpack.c.b16 %v396, %v394
    %v421 = vpack.c.b16 %v397, %v395
    %v422 = vpack.c.b16 %v400, %v398
    %v423 = vpack.c.b16 %v401, %v399
    %v424 = vpack.c.b16 %v404, %v402
    %v425 = vpack.c.b16 %v405, %v403
    %v426 = vpack.c.b16 %v408, %v406
    %v427 = vpack.c.b16 %v409, %v407
    %v428 = vpack.c.b16 %v412, %v410
    %v429 = vpack.c.b16 %v413, %v411
    %446 = vmatprep.subr.bf16.mxu0 %v415
    %447 = vmatpush1.bf16.msra.mxu0 %v414
    %448 = vmatprep.subr.bf16.mxu0 %v417
    %449 = vmatpush1.bf16.msra.mxu0 %v416
    %450 = vmatprep.subr.bf16.mxu0 %v419
    %451 = vmatpush1.bf16.msra.mxu0 %v418
    %452 = vmatprep.subr.bf16.mxu0 %v421
    %453 = vmatpush1.bf16.msra.mxu0 %v420
    %454 = vmatprep.subr.bf16.mxu0 %v423
    %455 = vmatpush1.bf16.msra.mxu0 %v422
    %456 = vmatprep.subr.bf16.mxu0 %v425
    %457 = vmatpush1.bf16.msra.mxu0 %v424
    %458 = vmatprep.subr.bf16.mxu0 %v427
    %459 = vmatpush1.bf16.msra.mxu0 %v426
    %460 = vmatprep.subr.bf16.mxu0 %v429
    %461 = vmatpush1.bf16.msra.mxu0 %v428
    %462 = vmatprep.subr.bf16.mxu0 0
    %463 = vmatpush1.bf16.msra.mxu0 0
    %464 = vmatprep.subr.bf16.mxu0 0
    %465 = vmatpush1.bf16.msra.mxu0 0
    %466 = vmatprep.subr.bf16.mxu0 0
    %467 = vmatpush1.bf16.msra.mxu0 0
    %468 = vmatprep.subr.bf16.mxu0 0
    %469 = vmatpush1.bf16.msra.mxu0 0
    %470 = vmatprep.subr.bf16.mxu0 0
    %471 = vmatpush1.bf16.msra.mxu0 0
    %472 = vmatprep.subr.bf16.mxu0 0
    %473 = vmatpush1.bf16.msra.mxu0 0
    %474 = vmatprep.subr.bf16.mxu0 0
    %475 = vmatpush1.bf16.msra.mxu0 0
    %476 = vmatprep.subr.bf16.mxu0 0
    %477 = vmatpush1.bf16.msra.mxu0 0
    %478 = vmatprep.mubr.bf16.mxu0 0
    %479 = vmatmul.mubr.bf16.gmra.mrb[0].mxu0 %v91
    %v480 = vpop.f32.mrb[0].mxu0
    %v481 = vadd.f32 0.0, %v480
    %v482 = vpop.f32.mrb[0].mxu0
    %v483 = vadd.f32 0.0, %v482
    %v484 = vpop.f32.mrb[0].mxu0
    %v485 = vpop.f32.mrb[0].mxu0
    %486 = vdwg.mxu0
    %v487 = vadd.f32 %v304, %v481
    %v488 = vxor.u32 %v487, 2147483648
    %v489 = vmul.f32 %v488, 1.442695
    %v490 = vpow.pop %v489
    %v491 = vadd.f32 %v490, 1.0
    %v492 = vrcp.pop %v491
    %v493 = vmul.f32 1.0, %v492
    %v494 = vadd.f32 %v306, %v483
    %v495 = vxor.u32 %v494, 2147483648
    %v496 = vmul.f32 %v495, 1.442695
    %v497 = vpow.pop %v496
    %v498 = vadd.f32 %v497, 1.0
    %v499 = vrcp.pop %v498
    %v500 = vmul.f32 1.0, %v499
    %v501 = vmul.f32 %v90, %v493
    %v502 = vpack.c.bf16 %v501, %v501
    %v503 = vld [vmem:[#allocation10] sm:$0xf]
    %v504 = vld [vmem:[#allocation10 + $0x4] sm:$0xf]
    %v505 = vld [vmem:[#allocation10 + $0x8] sm:$0xf]
    %v506 = vld [vmem:[#allocation10 + $0xc] sm:$0xf]
    %v507 = vld [vmem:[#allocation10 + $0x10] sm:$0xf]
    %v508 = vld [vmem:[#allocation10 + $0x14] sm:$0xf]
    %v509 = vld [vmem:[#allocation10 + $0x18] sm:$0xf]
    %v510 = vld [vmem:[#allocation10 + $0x1c] sm:$0xf]
    %v511 = vld [vmem:[#allocation10 + $0x20] sm:$0xf]
    %v512 = vld [vmem:[#allocation10 + $0x24] sm:$0xf]
    %v513 = vld [vmem:[#allocation10 + $0x28] sm:$0xf]
    %v514 = vld [vmem:[#allocation10 + $0x2c] sm:$0xf]
    %v515 = vld [vmem:[#allocation10 + $0x30] sm:$0xf]
    %v516 = vld [vmem:[#allocation10 + $0x34] sm:$0xf]
    %v517 = vld [vmem:[#allocation10 + $0x38] sm:$0xf]
    %v518 = vld [vmem:[#allocation10 + $0x3c] sm:$0xf]
    %v535 = vunpack.c.l.b16 %v503
    %v536 = vunpack.c.l.b16 %v504
    %v537 = vunpack.c.l.b16 %v505
    %v538 = vunpack.c.l.b16 %v506
    %v539 = vunpack.c.l.b16 %v507
    %v540 = vunpack.c.l.b16 %v508
    %v541 = vunpack.c.l.b16 %v509
    %v542 = vunpack.c.l.b16 %v510
    %v543 = vunpack.c.l.b16 %v511
    %v544 = vunpack.c.l.b16 %v512
    %v545 = vunpack.c.l.b16 %v513
    %v546 = vunpack.c.l.b16 %v514
    %v547 = vunpack.c.l.b16 %v515
    %v548 = vunpack.c.l.b16 %v516
    %v549 = vunpack.c.l.b16 %v517
    %v550 = vunpack.c.l.b16 %v518
    %v551 = vpack.c.b16 %v536, %v535
    %v552 = vpack.c.b16 %v538, %v537
    %v553 = vpack.c.b16 %v540, %v539
    %v554 = vpack.c.b16 %v542, %v541
    %v555 = vpack.c.b16 %v544, %v543
    %v556 = vpack.c.b16 %v546, %v545
    %v557 = vpack.c.b16 %v548, %v547
    %v558 = vpack.c.b16 %v550, %v549
    %567 = vmatprep.subr.bf16.mxu0 0
    %568 = vmatpush1.bf16.msra.mxu0 %v551
    %569 = vmatprep.subr.bf16.mxu0 0
    %570 = vmatpush1.bf16.msra.mxu0 %v552
    %571 = vmatprep.subr.bf16.mxu0 0
    %572 = vmatpush1.bf16.msra.mxu0 %v553
    %573 = vmatprep.subr.bf16.mxu0 0
    %574 = vmatpush1.bf16.msra.mxu0 %v554
    %575 = vmatprep.subr.bf16.mxu0 0
    %576 = vmatpush1.bf16.msra.mxu0 %v555
    %577 = vmatprep.subr.bf16.mxu0 0
    %578 = vmatpush1.bf16.msra.mxu0 %v556
    %579 = vmatprep.subr.bf16.mxu0 0
    %580 = vmatpush1.bf16.msra.mxu0 %v557
    %581 = vmatprep.subr.bf16.mxu0 0
    %582 = vmatpush1.bf16.msra.mxu0 %v558
    %583 = vmatprep.subr.bf16.mxu0 0
    %584 = vmatpush1.bf16.msra.mxu0 0
    %585 = vmatprep.subr.bf16.mxu0 0
    %586 = vmatpush1.bf16.msra.mxu0 0
    %587 = vmatprep.subr.bf16.mxu0 0
    %588 = vmatpush1.bf16.msra.mxu0 0
    %589 = vmatprep.subr.bf16.mxu0 0
    %590 = vmatpush1.bf16.msra.mxu0 0
    %591 = vmatprep.subr.bf16.mxu0 0
    %592 = vmatpush1.bf16.msra.mxu0 0
    %593 = vmatprep.subr.bf16.mxu0 0
    %594 = vmatpush1.bf16.msra.mxu0 0
    %595 = vmatprep.subr.bf16.mxu0 0
    %596 = vmatpush1.bf16.msra.mxu0 0
    %597 = vmatprep.subr.bf16.mxu0 0
    %598 = vmatpush1.bf16.msra.mxu0 0
    %599 = vmatprep.mubr.bf16.mxu0 0
    %600 = vmatmul.mubr.bf16.gmra.mrb[0].mxu0 %v502
    %v601 = vpop.f32.mrb[0].mxu0
    %v602 = vadd.f32 0.0, %v601
    %v603 = vpop.f32.mrb[0].mxu0
    %v604 = vpop.f32.mrb[0].mxu0
    %v605 = vpop.f32.mrb[0].mxu0
    %606 = vdwg.mxu0
    %v607 = vadd.f32 %v345, %v602
    %v608 = vtanh.pop %v607
    %v609 = vsub.f32 %v90, %v608
    %v610 = vmul.f32 %v500, %v609
    %v611 = vadd.f32 %v608, %v610
    %612 = vst [vmem:[#allocation11] sm:$0xff] %v611
    // Predicated region
    $region46: #{tpu_custom_call.1} parent=1 // pred_check
      _
    $region47: #{tpu_custom_call.1} parent=1 // pred_check_branch
      %614 = sbr.rel (0) target = $region49
    $region48: #{tpu_custom_call.1} parent=1 // pred_region
      %s616 = ssub.s32 128, 128
      %617 = vsyncadd [#allocation4], %s616
      %s619 = sshll.u32 [#allocation11], 4
      %s620 = int_to_ptr.vmem [resolvable:$true] %s619
      %622 = dma.vmem_to_hbm [thread:$0]  %s620, 128, %s6, [#allocation4]
    $region49: #{tpu_custom_call.1} parent=1 // pred_fallthru
      _
    // Predicated region
    $region50: #{tpu_custom_call.1} parent=1 // pred_check
      _
    $region51: #{tpu_custom_call.1} parent=1 // pred_check_branch
      %624 = sbr.rel (0) target = $region53
    $region52: #{tpu_custom_call.1} parent=1 // pred_region
      %625 = dma.done [#allocation4], 128
    $region53: #{tpu_custom_call.1} parent=1 // pred_fallthru
      _
    %626 = vsyncpa [#allocation3], 1
    %627 = vsyncpa [#allocation6], 1
    %628 = vsyncpa [#allocation9], 1
    %629 = vsyncpa [#allocation4], 1

</llo_original>
